<compile_context>
chip_gen: v6e
topology: v6e:2x2x1
jax: 0.10.0
libtpu: 0.0.40
codegen_flags: <defaults>
</compile_context>

<pallas_src>
import jax
import jax.numpy as jnp
from jax.experimental import pallas as pl
from jax.experimental.pallas import tpu as pltpu


def _round_up(n, m):
    return ((n + m - 1) // m) * m


def _dqn_kernel(x_ref, w1_ref, b1_ref, w2_ref, b2_ref, w3_ref, b3_ref, o_ref):
    x = x_ref[...]                      # [TB, 4]   f32
    w1 = w1_ref[...]                    # [4, 128]  f32

    # Layer 1 on the VPU: K=4 contraction as 4 broadcast FMAs (keeps the MXU slot
    # free, folds in the bias). Elementwise math stays f32 (v5e has no bf16 VPU).
    h1 = b1_ref[...]                    # [1, 128] broadcasts to [TB, 128]
    h1 = h1 + x[:, 0:1] * w1[0:1, :]
    h1 = h1 + x[:, 1:2] * w1[1:2, :]
    h1 = h1 + x[:, 2:3] * w1[2:3, :]
    h1 = h1 + x[:, 3:4] * w1[3:4, :]
    h1 = jnp.maximum(h1, 0.0)

    # Layer 2: bf16 MXU matmul, f32 accumulate.
    h2 = jnp.dot(h1.astype(jnp.bfloat16), w2_ref[...],
                 preferred_element_type=jnp.float32)
    h2 = jnp.maximum(h2 + b2_ref[...], 0.0)

    # Layer 3: bf16 MXU with the weight padded to a 128-wide slab (clean MXU shape),
    # then slice back to the real action columns before the store so HBM write
    # traffic stays n_actions wide (masked lane store; vst slot has plenty of slack).
    out = jnp.dot(h2.astype(jnp.bfloat16), w3_ref[...],
                  preferred_element_type=jnp.float32) + b3_ref[...]
    n_out = o_ref.shape[1]
    o_ref[...] = out[:, :n_out].astype(o_ref.dtype)


def dqn_forward(x, params, *, tile_b=2048):
    """Fused DQN forward. x: [B, 4] float32 -> [B, n_actions] float32."""
    w1, b1, w2, b2, w3, b3 = params
    B = x.shape[0]
    hidden = w1.shape[1]                 # 128
    n_actions = w3.shape[1]

    # Pad w3/b3 to a lane-dense 128-column slab (resident, ~32 KB bf16) so the
    # final matmul is a clean MXU shape; the kernel slices back before storing.
    n_pad = _round_up(max(n_actions, 1), 128)
    w3p = jnp.zeros((hidden, n_pad), jnp.float32).at[:, :n_actions].set(w3)
    b3p = jnp.zeros((1, n_pad), jnp.float32).at[:, :n_actions].set(b3)

    # bf16 inputs for the 128-wide matmuls (f32 accumulation happens in-kernel).
    w2_bf = w2.astype(jnp.bfloat16)
    w3p_bf = w3p.astype(jnp.bfloat16)

    # Batch tile: big enough to amortize per-grid-step overhead, but capped so the
    # grid has >= 2 steps whenever B > 8 (v7x megacore sharding of the parallel axis).
    tb_cap = max(8, _round_up(pl.cdiv(B, 2), 8))
    tb = min(_round_up(tile_b, 8), tb_cap)
    grid = (pl.cdiv(B, tb),)             # partial last block handled by Pallas masking

    resident = lambda shape: pl.BlockSpec(shape, lambda i: (0, 0))

    flops = 2 * B * (4 * hidden + hidden * hidden + hidden * n_actions)
    bytes_accessed = (
        B * 4 * 4                                    # x (f32)
        + B * n_actions * 4                          # out (f32, narrow)
        + (4 * hidden + hidden) * 4                  # w1, b1 (f32)
        + hidden * hidden * 2 + hidden * 4           # w2 (bf16), b2 (f32)
        + hidden * n_pad * 2 + n_pad * 4             # w3 padded (bf16), b3 padded (f32)
    )

    out = pl.pallas_call(
        _dqn_kernel,
        out_shape=jax.ShapeDtypeStruct((B, n_actions), jnp.float32),
        grid_spec=pltpu.PrefetchScalarGridSpec(
            num_scalar_prefetch=0,
            grid=grid,
            in_specs=[
                pl.BlockSpec((tb, 4), lambda i: (i, 0)),   # x tile
                resident((4, hidden)),                     # w1
                resident((1, hidden)),                     # b1
                resident((hidden, hidden)),                # w2 (bf16)
                resident((1, hidden)),                     # b2
                resident((hidden, n_pad)),                 # w3 padded (bf16)
                resident((1, n_pad)),                      # b3 padded
            ],
            out_specs=pl.BlockSpec((tb, n_actions), lambda i: (i, 0)),
        ),
        compiler_params=pltpu.CompilerParams(
            dimension_semantics=("parallel",),             # megacore-shard batch on v7x
        ),
        cost_estimate=pl.CostEstimate(
            flops=flops, transcendentals=0, bytes_accessed=bytes_accessed),
    )(x, w1, b1, w2_bf, b2, w3p_bf, b3p)

    return out


def init_dqn_params(key, n_actions):
    """Deterministic PyTorch-style (uniform +/- 1/sqrt(fan_in)) init, [in, out] weight layout."""
    ks = jax.random.split(key, 6)

    def linear(kw, kb, fan_in, fan_out):
        bound = 1.0 / jnp.sqrt(jnp.float32(fan_in))
        w = jax.random.uniform(kw, (fan_in, fan_out), jnp.float32, -bound, bound)
        b = jax.random.uniform(kb, (1, fan_out), jnp.float32, -bound, bound)
        return w, b

    w1, b1 = linear(ks[0], ks[1], 4, 128)
    w2, b2 = linear(ks[2], ks[3], 128, 128)
    w3, b3 = linear(ks[4], ks[5], 128, n_actions)
    return (w1, b1, w2, b2, w3, b3)


def dqn_reference(x, params):
    """Pure-JAX f32 reference for correctness checking."""
    w1, b1, w2, b2, w3, b3 = params
    h = jnp.maximum(x @ w1 + b1, 0.0)
    h = jnp.maximum(h @ w2 + b2, 0.0)
    return h @ w3 + b3


if __name__ == "__main__":
    key = jax.random.PRNGKey(0)
    k_x1, k_x2, k_p = jax.random.split(key, 3)

    n_actions = 2  # e.g. CartPole
    params = init_dqn_params(k_p, n_actions)

    # Case 1: small, 8-aligned batch (single grid step).
    x1 = jax.random.normal(k_x1, (8, 4), dtype=jnp.float32)
    out1 = jax.block_until_ready(dqn_forward(x1, params))
    ref1 = dqn_reference(x1, params)
    assert out1.shape == (8, n_actions)
    # bf16 MXU inputs (f32 acc) vs pure-f32 reference: loose tolerance, fine for DQN.
    assert jnp.allclose(out1, ref1, atol=1e-2, rtol=1e-2), "mismatch vs reference (B=8)"

    # Case 2: ragged batch -> exercises the multi-step grid and the partial last tile.
    x2 = jax.random.normal(k_x2, (37, 4), dtype=jnp.float32)
    out2 = jax.block_until_ready(dqn_forward(x2, params))
    ref2 = dqn_reference(x2, params)
    assert out2.shape == (37, n_actions)
    assert jnp.allclose(out2, ref2, atol=1e-2, rtol=1e-2), "mismatch vs reference (B=37)"

    print("KERNEL_OK")
</pallas_src>

<mosaic_0001>
module attributes {stable_mosaic.version = 11 : i64} {
  func.func @_dqn_kernel(%arg0: i32, %arg1: memref<8x4xf32, #tpu.memory_space<vmem>>, %arg2: memref<4x128xf32, #tpu.memory_space<vmem>>, %arg3: memref<1x128xf32, #tpu.memory_space<vmem>>, %arg4: memref<128x128xbf16, #tpu.memory_space<vmem>>, %arg5: memref<1x128xf32, #tpu.memory_space<vmem>>, %arg6: memref<128x128xbf16, #tpu.memory_space<vmem>>, %arg7: memref<1x128xf32, #tpu.memory_space<vmem>>, %arg8: memref<8x2xf32, #tpu.memory_space<vmem>>) attributes {dimension_semantics = [#tpu.dimension_semantics<parallel>], iteration_bounds = array<i64: 1>, scalar_prefetch = 0 : i64, scratch_operands = 0 : i64, tpu.core_type = #tpu.core_type<tc>, window_params = [{transform_indices = @transform_0, window_bounds = array<i64: 8, 4>}, {pipeline_mode = #tpu.pipeline_mode<synchronous>, transform_indices = @transform_1, window_bounds = array<i64: 4, 128>}, {pipeline_mode = #tpu.pipeline_mode<synchronous>, transform_indices = @transform_2, window_bounds = array<i64: 1, 128>}, {pipeline_mode = #tpu.pipeline_mode<synchronous>, transform_indices = @transform_3, window_bounds = array<i64: 128, 128>}, {pipeline_mode = #tpu.pipeline_mode<synchronous>, transform_indices = @transform_4, window_bounds = array<i64: 1, 128>}, {pipeline_mode = #tpu.pipeline_mode<synchronous>, transform_indices = @transform_5, window_bounds = array<i64: 128, 128>}, {pipeline_mode = #tpu.pipeline_mode<synchronous>, transform_indices = @transform_6, window_bounds = array<i64: 1, 128>}, {transform_indices = @transform_7, window_bounds = array<i64: 8, 2>}]} {
    %c0 = arith.constant 0 : index
    %c0_0 = arith.constant 0 : index
    %0 = vector.load %arg1[%c0, %c0_0] : memref<8x4xf32, #tpu.memory_space<vmem>>, vector<8x4xf32>
    %c0_1 = arith.constant 0 : index
    %c0_2 = arith.constant 0 : index
    %1 = vector.load %arg2[%c0_1, %c0_2] : memref<4x128xf32, #tpu.memory_space<vmem>>, vector<4x128xf32>
    %c0_3 = arith.constant 0 : index
    %c0_4 = arith.constant 0 : index
    %2 = vector.load %arg3[%c0_3, %c0_4] : memref<1x128xf32, #tpu.memory_space<vmem>>, vector<1x128xf32>
    %3 = vector.extract_strided_slice %0 {offsets = [0, 0], sizes = [8, 1], strides = [1, 1]} : vector<8x4xf32> to vector<8x1xf32>
    %4 = vector.extract_strided_slice %1 {offsets = [0, 0], sizes = [1, 128], strides = [1, 1]} : vector<4x128xf32> to vector<1x128xf32>
    %5 = vector.broadcast %3 : vector<8x1xf32> to vector<8x128xf32>
    %6 = vector.broadcast %4 : vector<1x128xf32> to vector<8x128xf32>
    %7 = arith.mulf %5, %6 : vector<8x128xf32>
    %8 = vector.broadcast %2 : vector<1x128xf32> to vector<8x128xf32>
    %9 = arith.addf %8, %7 : vector<8x128xf32>
    %10 = vector.extract_strided_slice %0 {offsets = [0, 1], sizes = [8, 1], strides = [1, 1]} : vector<8x4xf32> to vector<8x1xf32>
    %11 = vector.extract_strided_slice %1 {offsets = [1, 0], sizes = [1, 128], strides = [1, 1]} : vector<4x128xf32> to vector<1x128xf32>
    %12 = vector.broadcast %10 : vector<8x1xf32> to vector<8x128xf32>
    %13 = vector.broadcast %11 : vector<1x128xf32> to vector<8x128xf32>
    %14 = arith.mulf %12, %13 : vector<8x128xf32>
    %15 = arith.addf %9, %14 : vector<8x128xf32>
    %16 = vector.extract_strided_slice %0 {offsets = [0, 2], sizes = [8, 1], strides = [1, 1]} : vector<8x4xf32> to vector<8x1xf32>
    %17 = vector.extract_strided_slice %1 {offsets = [2, 0], sizes = [1, 128], strides = [1, 1]} : vector<4x128xf32> to vector<1x128xf32>
    %18 = vector.broadcast %16 : vector<8x1xf32> to vector<8x128xf32>
    %19 = vector.broadcast %17 : vector<1x128xf32> to vector<8x128xf32>
    %20 = arith.mulf %18, %19 : vector<8x128xf32>
    %21 = arith.addf %15, %20 : vector<8x128xf32>
    %22 = vector.extract_strided_slice %0 {offsets = [0, 3], sizes = [8, 1], strides = [1, 1]} : vector<8x4xf32> to vector<8x1xf32>
    %23 = vector.extract_strided_slice %1 {offsets = [3, 0], sizes = [1, 128], strides = [1, 1]} : vector<4x128xf32> to vector<1x128xf32>
    %24 = vector.broadcast %22 : vector<8x1xf32> to vector<8x128xf32>
    %25 = vector.broadcast %23 : vector<1x128xf32> to vector<8x128xf32>
    %26 = arith.mulf %24, %25 : vector<8x128xf32>
    %27 = arith.addf %21, %26 : vector<8x128xf32>
    %cst = arith.constant 0.000000e+00 : f32
    %28 = vector.broadcast %cst : f32 to vector<8x128xf32>
    %29 = arith.maximumf %27, %28 : vector<8x128xf32>
    %30 = arith.truncf %29 : vector<8x128xf32> to vector<8x128xbf16>
    %c0_5 = arith.constant 0 : index
    %c0_6 = arith.constant 0 : index
    %31 = vector.load %arg4[%c0_5, %c0_6] : memref<128x128xbf16, #tpu.memory_space<vmem>>, vector<128x128xbf16>
    %cst_7 = arith.constant dense<0.000000e+00> : vector<8x128xf32>
    %32 = tpu.matmul %30, %31, %cst_7 {dimension_numbers = #tpu.dot_dimension_numbers<[1], [0], [0], [1], [0, 0, 1, 1], [], []>} : vector<8x128xbf16>, vector<128x128xbf16>, vector<8x128xf32> -> vector<8x128xf32>
    %c0_8 = arith.constant 0 : index
    %c0_9 = arith.constant 0 : index
    %33 = vector.load %arg5[%c0_8, %c0_9] : memref<1x128xf32, #tpu.memory_space<vmem>>, vector<1x128xf32>
    %34 = vector.broadcast %33 : vector<1x128xf32> to vector<8x128xf32>
    %35 = arith.addf %32, %34 : vector<8x128xf32>
    %cst_10 = arith.constant 0.000000e+00 : f32
    %36 = vector.broadcast %cst_10 : f32 to vector<8x128xf32>
    %37 = arith.maximumf %35, %36 : vector<8x128xf32>
    %38 = arith.truncf %37 : vector<8x128xf32> to vector<8x128xbf16>
    %c0_11 = arith.constant 0 : index
    %c0_12 = arith.constant 0 : index
    %39 = vector.load %arg6[%c0_11, %c0_12] : memref<128x128xbf16, #tpu.memory_space<vmem>>, vector<128x128xbf16>
    %cst_13 = arith.constant dense<0.000000e+00> : vector<8x128xf32>
    %40 = tpu.matmul %38, %39, %cst_13 {dimension_numbers = #tpu.dot_dimension_numbers<[1], [0], [0], [1], [0, 0, 1, 1], [], []>} : vector<8x128xbf16>, vector<128x128xbf16>, vector<8x128xf32> -> vector<8x128xf32>
    %c0_14 = arith.constant 0 : index
    %c0_15 = arith.constant 0 : index
    %41 = vector.load %arg7[%c0_14, %c0_15] : memref<1x128xf32, #tpu.memory_space<vmem>>, vector<1x128xf32>
    %42 = vector.broadcast %41 : vector<1x128xf32> to vector<8x128xf32>
    %43 = arith.addf %40, %42 : vector<8x128xf32>
    %44 = vector.extract_strided_slice %43 {offsets = [0, 0], sizes = [8, 2], strides = [1, 1]} : vector<8x128xf32> to vector<8x2xf32>
    %c0_16 = arith.constant 0 : index
    %c0_17 = arith.constant 0 : index
    %45 = vector.load %arg8[%c0_16, %c0_17] : memref<8x2xf32, #tpu.memory_space<vmem>>, vector<8x2xf32>
    tpu.vector_store %arg8[%c0_16, %c0_17], %44 {strides = array<i32>} : memref<8x2xf32, #tpu.memory_space<vmem>>, vector<8x2xf32>,
    return
  }
  func.func @transform_0(%arg0: i32) -> (i32, i32) {
    %c0_i32 = arith.constant 0 : i32
    %c0_i32_0 = arith.constant 0 : i32
    return %arg0, %c0_i32 : i32, i32
  }
  func.func @transform_1(%arg0: i32) -> (i32, i32) {
    %c0_i32 = arith.constant 0 : i32
    %c0_i32_0 = arith.constant 0 : i32
    %c0_i32_1 = arith.constant 0 : i32
    return %c0_i32, %c0_i32_0 : i32, i32
  }
  func.func @transform_2(%arg0: i32) -> (i32, i32) {
    %c0_i32 = arith.constant 0 : i32
    %c0_i32_0 = arith.constant 0 : i32
    %c0_i32_1 = arith.constant 0 : i32
    return %c0_i32, %c0_i32_0 : i32, i32
  }
  func.func @transform_3(%arg0: i32) -> (i32, i32) {
    %c0_i32 = arith.constant 0 : i32
    %c0_i32_0 = arith.constant 0 : i32
    %c0_i32_1 = arith.constant 0 : i32
    return %c0_i32, %c0_i32_0 : i32, i32
  }
  func.func @transform_4(%arg0: i32) -> (i32, i32) {
    %c0_i32 = arith.constant 0 : i32
    %c0_i32_0 = arith.constant 0 : i32
    %c0_i32_1 = arith.constant 0 : i32
    return %c0_i32, %c0_i32_0 : i32, i32
  }
  func.func @transform_5(%arg0: i32) -> (i32, i32) {
    %c0_i32 = arith.constant 0 : i32
    %c0_i32_0 = arith.constant 0 : i32
    %c0_i32_1 = arith.constant 0 : i32
    return %c0_i32, %c0_i32_0 : i32, i32
  }
  func.func @transform_6(%arg0: i32) -> (i32, i32) {
    %c0_i32 = arith.constant 0 : i32
    %c0_i32_0 = arith.constant 0 : i32
    %c0_i32_1 = arith.constant 0 : i32
    return %c0_i32, %c0_i32_0 : i32, i32
  }
  func.func @transform_7(%arg0: i32) -> (i32, i32) {
    %c0_i32 = arith.constant 0 : i32
    %c0_i32_0 = arith.constant 0 : i32
    return %arg0, %c0_i32 : i32, i32
  }
}

</mosaic_0001>

<llo_original>
// kernel: tpu_custom_call.1
$region0: #{tpu_custom_call.1}
  #allocation0 [shape = 'u32[]', space=smem, size = 0x4, offset = 0x4, fixed_abs, tag = 'smem constant byte address 0x4 - core index']
  #allocation1 [shape = 'u32[144,128]{1,0:T(1,128)}', space=vmem, size = 0x12000, scoped, tag = 'internal scratch']
  %s0 = inlined_call_operand.vmem [shape: f32[8,4], index: 0, kind: input, shape index: {}]
  %s1 = inlined_call_operand.vmem [shape: f32[4,128], index: 1, kind: input, shape index: {}]
  %s2 = inlined_call_operand.vmem [shape: f32[1,128], index: 2, kind: input, shape index: {}]
  %s3 = inlined_call_operand.hbm [shape: bf16[128,128], index: 3, kind: input, shape index: {}]
  %s4 = inlined_call_operand.vmem [shape: f32[1,128], index: 4, kind: input, shape index: {}]
  %s5 = inlined_call_operand.hbm [shape: bf16[128,128], index: 5, kind: input, shape index: {}]
  %s6 = inlined_call_operand.vmem [shape: f32[1,128], index: 6, kind: input, shape index: {}]
  %s7 = inlined_call_operand.vmem [shape: f32[8,2], index: 7, kind: output, shape index: {}]
  %s8 = sld [smem:[#allocation0]]
  $region46: #{tpu_custom_call.1} parent=0
    _
  %s10 = ssub.s32 1, %s8
  %s11 = scalar_select 0, %s10, %s8
  $region1: #{tpu_custom_call.1} parent=0
    #allocation2 [shape = 'u8[32768]{0}', space=vmem, size = 0x8000, scoped, tag = 'input window, operand 3, single buffered']
    #allocation3 [shape = 's32[1]{0}', space=sflag, size = 0x4, scoped, tag = 'scoped memory for tpu_custom_call.1']
    #allocation4 [shape = 'u8[32768]{0}', space=vmem, size = 0x8000, scoped, tag = 'input window, operand 5, single buffered']
    #allocation5 [shape = 's32[1]{0}', space=sflag, size = 0x4, scoped, tag = 'scoped memory for tpu_custom_call.1']
    %12 = vsyncpa [#allocation3], 0
    %13 = vsyncpa [#allocation5], 0
    // Predicated region
    $region2: #{tpu_custom_call.1} parent=1 // pred_check
      _
    $region3: #{tpu_custom_call.1} parent=1 // pred_check_branch
      %15 = sbr.rel (0) target = $region5
    $region4: #{tpu_custom_call.1} parent=1 // pred_region
      _
    $region5: #{tpu_custom_call.1} parent=1 // pred_fallthru
      _
    // Predicated region
    $region6: #{tpu_custom_call.1} parent=1 // pred_check
      _
    $region7: #{tpu_custom_call.1} parent=1 // pred_check_branch
      %17 = sbr.rel (0) target = $region9
    $region8: #{tpu_custom_call.1} parent=1 // pred_region
      _
    $region9: #{tpu_custom_call.1} parent=1 // pred_fallthru
      _
    // Predicated region
    $region10: #{tpu_custom_call.1} parent=1 // pred_check
      _
    $region11: #{tpu_custom_call.1} parent=1 // pred_check_branch
      %19 = sbr.rel (0) target = $region13
    $region12: #{tpu_custom_call.1} parent=1 // pred_region
      _
    $region13: #{tpu_custom_call.1} parent=1 // pred_fallthru
      _
    // Predicated region
    $region14: #{tpu_custom_call.1} parent=1 // pred_check
      _
    $region15: #{tpu_custom_call.1} parent=1 // pred_check_branch
      %21 = sbr.rel (0) target = $region17
    $region16: #{tpu_custom_call.1} parent=1 // pred_region
      %s23 = ssub.s32 1024, 1024
      %24 = vsyncadd [#allocation3], %s23
      %s25 = sshll.u32 [#allocation2], 4
      %s26 = int_to_ptr.vmem [resolvable:$true] %s25
      %31 = dma.hbm_to_vmem [thread:$0]  %s3, 1024, %s26, [#allocation3], 64, 64, 4
    $region17: #{tpu_custom_call.1} parent=1 // pred_fallthru
      _
    // Predicated region
    $region18: #{tpu_custom_call.1} parent=1 // pred_check
      _
    $region19: #{tpu_custom_call.1} parent=1 // pred_check_branch
      %33 = sbr.rel (0) target = $region21
    $region20: #{tpu_custom_call.1} parent=1 // pred_region
      _
    $region21: #{tpu_custom_call.1} parent=1 // pred_fallthru
      _
    // Predicated region
    $region22: #{tpu_custom_call.1} parent=1 // pred_check
      _
    $region23: #{tpu_custom_call.1} parent=1 // pred_check_branch
      %35 = sbr.rel (0) target = $region25
    $region24: #{tpu_custom_call.1} parent=1 // pred_region
      %s37 = ssub.s32 1024, 1024
      %38 = vsyncadd [#allocation5], %s37
      %s39 = sshll.u32 [#allocation4], 4
      %s40 = int_to_ptr.vmem [resolvable:$true] %s39
      %45 = dma.hbm_to_vmem [thread:$0]  %s5, 1024, %s40, [#allocation5], 64, 64, 4
    $region25: #{tpu_custom_call.1} parent=1 // pred_fallthru
      _
    // Predicated region
    $region26: #{tpu_custom_call.1} parent=1 // pred_check
      _
    $region27: #{tpu_custom_call.1} parent=1 // pred_check_branch
      %47 = sbr.rel (0) target = $region29
    $region28: #{tpu_custom_call.1} parent=1 // pred_region
      _
    $region29: #{tpu_custom_call.1} parent=1 // pred_fallthru
      _
    // Predicated region
    $region30: #{tpu_custom_call.1} parent=1 // pred_check
      _
    $region31: #{tpu_custom_call.1} parent=1 // pred_check_branch
      %49 = sbr.rel (0) target = $region33
    $region32: #{tpu_custom_call.1} parent=1 // pred_region
      %50 = dma.done [#allocation3], 1024
    $region33: #{tpu_custom_call.1} parent=1 // pred_fallthru
      _
    // Predicated region
    $region34: #{tpu_custom_call.1} parent=1 // pred_check
      _
    $region35: #{tpu_custom_call.1} parent=1 // pred_check_branch
      %52 = sbr.rel (0) target = $region37
    $region36: #{tpu_custom_call.1} parent=1 // pred_region
      %53 = dma.done [#allocation5], 1024
    $region37: #{tpu_custom_call.1} parent=1 // pred_fallthru
      _
    %v55 = vld [vmem:[%s0] sm:$0xff]
    %v56 = vld [vmem:[%s1] sm:$0xf]
    %v57 = vld [vmem:[%s2] sm:$0x1]
    %59 = vset.pattern.permute.xlu0 0
    %60 = vperm.xlu0 %59, %v55
    %v61 = vpop.permute.xlu0 %60
    %v63 = vlaneseq
    %v64 = vshrl.u32 %v63, 7
    %v65 = vsub.s32 0, %v64
    %v66 = vrot.slane %v56, %v65
    %v67 = vmul.f32 %v61, %v66
    %v69 = vlaneseq
    %v70 = vshrl.u32 %v69, 7
    %v71 = vsub.s32 0, %v70
    %v72 = vrot.slane %v57, %v71
    %v74 = vadd.f32 %v72, %v67
    %75 = vset.pattern.permute.xlu0 1
    %76 = vperm.xlu0 %75, %v55
    %v77 = vpop.permute.xlu0 %76
    %v79 = vlaneseq
    %v80 = vshrl.u32 %v79, 7
    %v81 = vsub.s32 1, %v80
    %v82 = vrot.slane %v56, %v81
    %v83 = vmul.f32 %v77, %v82
    %v84 = vadd.f32 %v74, %v83
    %85 = vset.pattern.permute.xlu0 2
    %86 = vperm.xlu0 %85, %v55
    %v87 = vpop.permute.xlu0 %86
    %v89 = vlaneseq
    %v90 = vshrl.u32 %v89, 7
    %v91 = vsub.s32 2, %v90
    %v92 = vrot.slane %v56, %v91
    %v93 = vmul.f32 %v87, %v92
    %v94 = vadd.f32 %v84, %v93
    %95 = vset.pattern.permute.xlu0 3
    %96 = vperm.xlu0 %95, %v55
    %v97 = vpop.permute.xlu0 %96
    %v99 = vlaneseq
    %v100 = vshrl.u32 %v99, 7
    %v101 = vsub.s32 3, %v100
    %v102 = vrot.slane %v56, %v101
    %v103 = vmul.f32 %v97, %v102
    %v104 = vadd.f32 %v94, %v103
    %v105 = vmax.f32 %v104, 0.0
    %v106 = vpack.c.bf16 %v105, %v105
    %v107 = vld [vmem:[#allocation2] sm:$0xf]
    %v108 = vld [vmem:[#allocation2 + $0x4] sm:$0xf]
    %v109 = vld [vmem:[#allocation2 + $0x8] sm:$0xf]
    %v110 = vld [vmem:[#allocation2 + $0xc] sm:$0xf]
    %v111 = vld [vmem:[#allocation2 + $0x10] sm:$0xf]
    %v112 = vld [vmem:[#allocation2 + $0x14] sm:$0xf]
    %v113 = vld [vmem:[#allocation2 + $0x18] sm:$0xf]
    %v114 = vld [vmem:[#allocation2 + $0x1c] sm:$0xf]
    %v115 = vld [vmem:[#allocation2 + $0x20] sm:$0xf]
    %v116 = vld [vmem:[#allocation2 + $0x24] sm:$0xf]
    %v117 = vld [vmem:[#allocation2 + $0x28] sm:$0xf]
    %v118 = vld [vmem:[#allocation2 + $0x2c] sm:$0xf]
    %v119 = vld [vmem:[#allocation2 + $0x30] sm:$0xf]
    %v120 = vld [vmem:[#allocation2 + $0x34] sm:$0xf]
    %v121 = vld [vmem:[#allocation2 + $0x38] sm:$0xf]
    %v122 = vld [vmem:[#allocation2 + $0x3c] sm:$0xf]
    %v123 = vld [vmem:[%s4] sm:$0x1]
    %v125 = vlaneseq
    %v126 = vshrl.u32 %v125, 7
    %v127 = vsub.s32 0, %v126
    %v128 = vrot.slane %v123, %v127
    %v146 = vunpack.c.l.b16 %v107
    %v147 = vunpack.c.l.b16 %v108
    %v148 = vunpack.c.l.b16 %v109
    %v149 = vunpack.c.l.b16 %v110
    %v150 = vunpack.c.l.b16 %v111
    %v151 = vunpack.c.l.b16 %v112
    %v152 = vunpack.c.l.b16 %v113
    %v153 = vunpack.c.l.b16 %v114
    %v154 = vunpack.c.l.b16 %v115
    %v155 = vunpack.c.l.b16 %v116
    %v156 = vunpack.c.l.b16 %v117
    %v157 = vunpack.c.l.b16 %v118
    %v158 = vunpack.c.l.b16 %v119
    %v159 = vunpack.c.l.b16 %v120
    %v160 = vunpack.c.l.b16 %v121
    %v161 = vunpack.c.l.b16 %v122
    %v162 = vpack.c.b16 %v147, %v146
    %v163 = vpack.c.b16 %v149, %v148
    %v164 = vpack.c.b16 %v151, %v150
    %v165 = vpack.c.b16 %v153, %v152
    %v166 = vpack.c.b16 %v155, %v154
    %v167 = vpack.c.b16 %v157, %v156
    %v168 = vpack.c.b16 %v159, %v158
    %v169 = vpack.c.b16 %v161, %v160
    %178 = vmatprep.subr.bf16.mxu0 0
    %179 = vmatpush1.bf16.msra.mxu0 %v169
    %180 = vmatprep.subr.bf16.mxu0 0
    %181 = vmatpush1.bf16.msra.mxu0 %v168
    %182 = vmatprep.subr.bf16.mxu0 0
    %183 = vmatpush1.bf16.msra.mxu0 %v167
    %184 = vmatprep.subr.bf16.mxu0 0
    %185 = vmatpush1.bf16.msra.mxu0 %v166
    %186 = vmatprep.subr.bf16.mxu0 0
    %187 = vmatpush1.bf16.msra.mxu0 %v165
    %188 = vmatprep.subr.bf16.mxu0 0
    %189 = vmatpush1.bf16.msra.mxu0 %v164
    %190 = vmatprep.subr.bf16.mxu0 0
    %191 = vmatpush1.bf16.msra.mxu0 %v163
    %192 = vmatprep.subr.bf16.mxu0 0
    %193 = vmatpush1.bf16.msra.mxu0 %v162
    %194 = vmatprep.subr.bf16.mxu0 0
    %195 = vmatpush2.bf16.msra.mxu0 0
    %196 = vmatprep.subr.bf16.mxu0 0
    %197 = vmatpush2.bf16.msra.mxu0 0
    %198 = vmatprep.subr.bf16.mxu0 0
    %199 = vmatpush2.bf16.msra.mxu0 0
    %200 = vmatprep.subr.bf16.mxu0 0
    %201 = vmatpush2.bf16.msra.mxu0 0
    %202 = vmatprep.subr.bf16.mxu0 0
    %203 = vmatpush2.bf16.msra.mxu0 0
    %204 = vmatprep.subr.bf16.mxu0 0
    %205 = vmatpush2.bf16.msra.mxu0 0
    %206 = vmatprep.subr.bf16.mxu0 0
    %207 = vmatpush2.bf16.msra.mxu0 0
    %208 = vmatprep.subr.bf16.mxu0 0
    %209 = vmatpush2.bf16.msra.mxu0 0
    %210 = vmatprep.mubr.bf16.mxu0 0
    %211 = vmatmul.mubr.bf16.gmra.mxu0 %v106
    %v212 = vpop.f32.mrf.mxu0
    %v213 = vadd.f32 %v128, %v212
    %v214 = vpop.f32.mrf.mxu0
    %v215 = vpop.f32.mrf.mxu0
    %v216 = vpop.f32.mrf.mxu0
    %217 = vdwg.mxu0
    %v218 = vmax.f32 %v213, 0.0
    %v219 = vpack.c.bf16 %v218, %v218
    %v220 = vld [vmem:[#allocation4] sm:$0xf]
    %v221 = vld [vmem:[#allocation4 + $0x4] sm:$0xf]
    %v222 = vld [vmem:[#allocation4 + $0x8] sm:$0xf]
    %v223 = vld [vmem:[#allocation4 + $0xc] sm:$0xf]
    %v224 = vld [vmem:[#allocation4 + $0x10] sm:$0xf]
    %v225 = vld [vmem:[#allocation4 + $0x14] sm:$0xf]
    %v226 = vld [vmem:[#allocation4 + $0x18] sm:$0xf]
    %v227 = vld [vmem:[#allocation4 + $0x1c] sm:$0xf]
    %v228 = vld [vmem:[#allocation4 + $0x20] sm:$0xf]
    %v229 = vld [vmem:[#allocation4 + $0x24] sm:$0xf]
    %v230 = vld [vmem:[#allocation4 + $0x28] sm:$0xf]
    %v231 = vld [vmem:[#allocation4 + $0x2c] sm:$0xf]
    %v232 = vld [vmem:[#allocation4 + $0x30] sm:$0xf]
    %v233 = vld [vmem:[#allocation4 + $0x34] sm:$0xf]
    %v234 = vld [vmem:[#allocation4 + $0x38] sm:$0xf]
    %v235 = vld [vmem:[#allocation4 + $0x3c] sm:$0xf]
    %v236 = vld [vmem:[%s6] sm:$0x1]
    %v238 = vlaneseq
    %v239 = vshrl.u32 %v238, 7
    %v240 = vsub.s32 0, %v239
    %v241 = vrot.slane %v236, %v240
    %v259 = vunpack.c.l.b16 %v220
    %v260 = vunpack.c.l.b16 %v221
    %v261 = vunpack.c.l.b16 %v222
    %v262 = vunpack.c.l.b16 %v223
    %v263 = vunpack.c.l.b16 %v224
    %v264 = vunpack.c.l.b16 %v225
    %v265 = vunpack.c.l.b16 %v226
    %v266 = vunpack.c.l.b16 %v227
    %v267 = vunpack.c.l.b16 %v228
    %v268 = vunpack.c.l.b16 %v229
    %v269 = vunpack.c.l.b16 %v230
    %v270 = vunpack.c.l.b16 %v231
    %v271 = vunpack.c.l.b16 %v232
    %v272 = vunpack.c.l.b16 %v233
    %v273 = vunpack.c.l.b16 %v234
    %v274 = vunpack.c.l.b16 %v235
    %v275 = vpack.c.b16 %v260, %v259
    %v276 = vpack.c.b16 %v262, %v261
    %v277 = vpack.c.b16 %v264, %v263
    %v278 = vpack.c.b16 %v266, %v265
    %v279 = vpack.c.b16 %v268, %v267
    %v280 = vpack.c.b16 %v270, %v269
    %v281 = vpack.c.b16 %v272, %v271
    %v282 = vpack.c.b16 %v274, %v273
    %291 = vmatprep.subr.bf16.mxu0 0
    %292 = vmatpush1.bf16.msra.mxu0 %v282
    %293 = vmatprep.subr.bf16.mxu0 0
    %294 = vmatpush1.bf16.msra.mxu0 %v281
    %295 = vmatprep.subr.bf16.mxu0 0
    %296 = vmatpush1.bf16.msra.mxu0 %v280
    %297 = vmatprep.subr.bf16.mxu0 0
    %298 = vmatpush1.bf16.msra.mxu0 %v279
    %299 = vmatprep.subr.bf16.mxu0 0
    %300 = vmatpush1.bf16.msra.mxu0 %v278
    %301 = vmatprep.subr.bf16.mxu0 0
    %302 = vmatpush1.bf16.msra.mxu0 %v277
    %303 = vmatprep.subr.bf16.mxu0 0
    %304 = vmatpush1.bf16.msra.mxu0 %v276
    %305 = vmatprep.subr.bf16.mxu0 0
    %306 = vmatpush1.bf16.msra.mxu0 %v275
    %307 = vmatprep.subr.bf16.mxu0 0
    %308 = vmatpush2.bf16.msra.mxu0 0
    %309 = vmatprep.subr.bf16.mxu0 0
    %310 = vmatpush2.bf16.msra.mxu0 0
    %311 = vmatprep.subr.bf16.mxu0 0
    %312 = vmatpush2.bf16.msra.mxu0 0
    %313 = vmatprep.subr.bf16.mxu0 0
    %314 = vmatpush2.bf16.msra.mxu0 0
    %315 = vmatprep.subr.bf16.mxu0 0
    %316 = vmatpush2.bf16.msra.mxu0 0
    %317 = vmatprep.subr.bf16.mxu0 0
    %318 = vmatpush2.bf16.msra.mxu0 0
    %319 = vmatprep.subr.bf16.mxu0 0
    %320 = vmatpush2.bf16.msra.mxu0 0
    %321 = vmatprep.subr.bf16.mxu0 0
    %322 = vmatpush2.bf16.msra.mxu0 0
    %323 = vmatprep.mubr.bf16.mxu0 0
    %324 = vmatmul.mubr.bf16.gmra.mxu0 %v219
    %v325 = vpop.f32.mrf.mxu0
    %v326 = vadd.f32 %v241, %v325
    %v327 = vpop.f32.mrf.mxu0
    %v328 = vpop.f32.mrf.mxu0
    %v329 = vpop.f32.mrf.mxu0
    %330 = vdwg.mxu0
    %vm331 = vcmask 15360
    %332 = vst.msk [vmem:[%s7] sm:$0xff] %vm331, %v326
    // Predicated region
    $region38: #{tpu_custom_call.1} parent=1 // pred_check
      _
    $region39: #{tpu_custom_call.1} parent=1 // pred_check_branch
      %334 = sbr.rel (0) target = $region41
    $region40: #{tpu_custom_call.1} parent=1 // pred_region
      _
    $region41: #{tpu_custom_call.1} parent=1 // pred_fallthru
      _
    // Predicated region
    $region42: #{tpu_custom_call.1} parent=1 // pred_check
      _
    $region43: #{tpu_custom_call.1} parent=1 // pred_check_branch
      %336 = sbr.rel (0) target = $region45
    $region44: #{tpu_custom_call.1} parent=1 // pred_region
      _
    $region45: #{tpu_custom_call.1} parent=1 // pred_fallthru
      _
    %337 = vsyncpa [#allocation3], 1
    %338 = vsyncpa [#allocation5], 1

</llo_original>
